<compile_context>
chip_gen: v7x
topology: tpu7x:2x2x1
jax: 0.10.0
libtpu: 0.0.40
codegen_flags: <defaults>
</compile_context>

<pallas_src>
import jax
import jax.numpy as jnp
from jax.experimental import pallas as pl
from jax.experimental.pallas import tpu as pltpu


def centerloss_kernel(ys_ref, feat_ref, invcnt_ref, center_hbm, out_ref,
                      gather_buf, gather_sem):
    """One TN-row tile of the batch.

    ys_ref      : SMEM (N_pad,) int32   -- scalar-prefetch labels (whole batch)
    feat_ref    : VMEM (TN, D)          -- features tile (native dtype)
    invcnt_ref  : VMEM (TN, 1) f32      -- 1 / count[ys] per sample (0 for padding)
    center_hbm  : ANY  (C, D)           -- class centers, left in HBM
    out_ref     : VMEM (TN, 1) f32      -- per-sample weighted squared distance
    gather_buf  : VMEM (TN, D) scratch  -- DMA-gathered center rows
    gather_sem  : DMA semaphores (TN,)
    """
    tile_n, _ = feat_ref.shape
    base = pl.program_id(0) * tile_n

    # --- DMA gather: gather_buf[r] <- center[ys[base + r]] -------------------
    # (Issue all row copies, then wait; no (N, C) one-hot, no MXU involved.)
    copies = []
    for r in range(tile_n):
        cls = ys_ref[base + r]
        cp = pltpu.make_async_copy(
            center_hbm.at[pl.ds(cls, 1), :],
            gather_buf.at[pl.ds(r, 1), :],
            gather_sem.at[r],
        )
        cp.start()
        copies.append(cp)
    for cp in copies:
        cp.wait()

    # --- per-sample loss term --------------------------------------------------
    feats = feat_ref[...].astype(jnp.float32)          # (TN, D)
    centers = gather_buf[...].astype(jnp.float32)      # (TN, D), f32-exact gather
    diff = feats - centers
    sq_sum = jnp.sum(diff * diff, axis=1, keepdims=True)   # (TN, 1)
    out_ref[...] = sq_sum * invcnt_ref[...]                 # padded rows: * 0


def centerloss(features, ys, center, lambdas=2.0, tile_n=None):
    """features: (N, D), ys: (N,) int labels in [0, C), center: (C, D)."""
    n, d = features.shape
    c = center.shape[0]
    ys = ys.astype(jnp.int32)

    # Global per-class histogram + per-sample inverse counts.  Counts are global
    # over the whole batch, so they cannot be formed per-tile in one pass inside
    # the gridded kernel; this O(N + C) scatter-add stays in the wrapper.
    counts = jnp.zeros((c,), jnp.float32).at[ys].add(1.0)
    count_exp = counts[ys]                                   # (N,), >= 1
    inv_count_exp = (1.0 / count_exp).reshape(n, 1)          # (N, 1)

    # --- tile over N -----------------------------------------------------------
    if tile_n is None:
        # Multiple of 8 (sublane); capped so the unrolled DMA-gather loop stays
        # small.  For very large N, raise tile_n for better DMA/compute overlap.
        tile_n = int(min(128, max(8, pl.next_power_of_2(n))))
    n_pad = pl.cdiv(n, tile_n) * tile_n
    if n_pad != n:
        pad = n_pad - n
        features = jnp.pad(features, ((0, pad), (0, 0)))
        ys_padded = jnp.pad(ys, (0, pad))                        # class 0
        inv_count_exp = jnp.pad(inv_count_exp, ((0, pad), (0, 0)))  # weight 0
    else:
        ys_padded = ys
    num_tiles = n_pad // tile_n

    grid_spec = pltpu.PrefetchScalarGridSpec(
        num_scalar_prefetch=1,                       # ys -> SMEM, visible to kernel
        grid=(num_tiles,),
        in_specs=[
            pl.BlockSpec((tile_n, d), lambda i, ys_s: (i, 0)),   # features tile
            pl.BlockSpec((tile_n, 1), lambda i, ys_s: (i, 0)),   # inv counts tile
            pl.BlockSpec(memory_space=pl.ANY),                    # center in HBM
        ],
        out_specs=pl.BlockSpec((tile_n, 1), lambda i, ys_s: (i, 0)),
        scratch_shapes=[
            pltpu.VMEM((tile_n, d), center.dtype),                # gather buffer
            pltpu.SemaphoreType.DMA((tile_n,)),                   # per-row DMA sems
        ],
    )

    per_sample = pl.pallas_call(
        centerloss_kernel,
        out_shape=jax.ShapeDtypeStruct((n_pad, 1), jnp.float32),
        grid_spec=grid_spec,
        compiler_params=pltpu.CompilerParams(
            dimension_semantics=("parallel",),        # no carried accumulator
            vmem_limit_bytes=32 * 1024 * 1024,        # explicit (v5e default 16 MiB)
        ),
    )(ys_padded, features, inv_count_exp, center)

    # lambdas/2 and the 1/N of the mean folded into one scalar multiply.
    return (float(lambdas) * 0.5 / n) * jnp.sum(per_sample)


def centerloss_ref(features, ys, center, lambdas=2.0):
    """Plain-JAX reference mirroring the PyTorch forward."""
    center_exp = center[ys]
    count = jnp.zeros((center.shape[0],), jnp.float32).at[ys].add(1.0)
    count_exp = count[ys]
    per_sample = jnp.sum((features - center_exp) ** 2, axis=1) / count_exp
    return (lambdas / 2.0) * jnp.mean(per_sample)


if __name__ == "__main__":
    key = jax.random.PRNGKey(0)
    k_center, k_feat, k_ys = jax.random.split(key, 3)

    N, D, C = 8, 2, 10
    # Deterministic synthetic parameter (nn.Parameter(torch.randn(10, 2))).
    center = jax.random.normal(k_center, (C, D), dtype=jnp.float32)
    features = jax.random.normal(k_feat, (N, D), dtype=jnp.float32)
    ys = jax.random.randint(k_ys, (N,), 0, C, dtype=jnp.int32)

    loss = centerloss(features, ys, center, lambdas=2.0)
    loss = jax.block_until_ready(loss)

    loss_ref = centerloss_ref(features, ys, center, lambdas=2.0)
    assert jnp.isfinite(loss), "kernel produced non-finite loss"
    assert jnp.allclose(loss, loss_ref, rtol=1e-5, atol=1e-5), (loss, loss_ref)

    print("KERNEL_OK")
</pallas_src>

<mosaic_0001>
module attributes {stable_mosaic.version = 11 : i64} {
  func.func @centerloss_kernel(%arg0: i32, %arg1: memref<8xi32, #tpu.memory_space<smem>>, %arg2: memref<8x2xf32, #tpu.memory_space<vmem>>, %arg3: memref<8x1xf32, #tpu.memory_space<vmem>>, %arg4: memref<10x2xf32, #tpu.memory_space<any>>, %arg5: memref<8x1xf32, #tpu.memory_space<vmem>>, %arg6: memref<8x2xf32, #tpu.memory_space<vmem>>, %arg7: memref<8x!tpu.dma_semaphore, #tpu.memory_space<semaphore_mem>>) attributes {dimension_semantics = [#tpu.dimension_semantics<parallel>], iteration_bounds = array<i64: 1>, scalar_prefetch = 1 : i64, scratch_operands = 2 : i64, tpu.core_type = #tpu.core_type<tc>, window_params = [{transform_indices = @transform_0, window_bounds = array<i64: 8, 2>}, {transform_indices = @transform_1, window_bounds = array<i64: 8, 1>}, {}, {transform_indices = @transform_3, window_bounds = array<i64: 8, 1>}]} {
    %c8_i32 = arith.constant 8 : i32
    %0 = arith.muli %arg0, %c8_i32 : i32
    %c0_i32 = arith.constant 0 : i32
    %1 = arith.addi %0, %c0_i32 : i32
    %2 = arith.index_cast %1 : i32 to index
    %3 = memref.load %arg1[%2] : memref<8xi32, #tpu.memory_space<smem>>
    %c0_i32_0 = arith.constant 0 : i32
    %c0_i32_1 = arith.constant 0 : i32
    %4 = tpu.memref_slice %arg4[%3, %c0_i32_1] : memref<10x2xf32, #tpu.memory_space<any>> -> memref<1x2xf32, #tpu.memory_space<any>>
    %c0_i32_2 = arith.constant 0 : i32
    %c0_i32_3 = arith.constant 0 : i32
    %5 = tpu.memref_slice %arg6[%c0_i32_2, %c0_i32_3] : memref<8x2xf32, #tpu.memory_space<vmem>> -> memref<1x2xf32, #tpu.memory_space<vmem>>
    %6 = tpu.memref_slice %arg7[%c0_i32_0] : memref<8x!tpu.dma_semaphore, #tpu.memory_space<semaphore_mem>> -> memref<1x!tpu.dma_semaphore, #tpu.memory_space<semaphore_mem>>
    %7 = tpu.memref_squeeze %6 : memref<1x!tpu.dma_semaphore, #tpu.memory_space<semaphore_mem>> -> memref<!tpu.dma_semaphore, #tpu.memory_space<semaphore_mem>>
    tpu.enqueue_dma source(%4 : memref<1x2xf32, #tpu.memory_space<any>>) target(%5 : memref<1x2xf32, #tpu.memory_space<vmem>>) target_semaphore(%7 : memref<!tpu.dma_semaphore, #tpu.memory_space<semaphore_mem>>)
    %c1_i32 = arith.constant 1 : i32
    %8 = arith.addi %0, %c1_i32 : i32
    %9 = arith.index_cast %8 : i32 to index
    %10 = memref.load %arg1[%9] : memref<8xi32, #tpu.memory_space<smem>>
    %c1_i32_4 = arith.constant 1 : i32
    %c0_i32_5 = arith.constant 0 : i32
    %11 = tpu.memref_slice %arg4[%10, %c0_i32_5] : memref<10x2xf32, #tpu.memory_space<any>> -> memref<1x2xf32, #tpu.memory_space<any>>
    %c1_i32_6 = arith.constant 1 : i32
    %c0_i32_7 = arith.constant 0 : i32
    %12 = tpu.memref_slice %arg6[%c1_i32_6, %c0_i32_7] : memref<8x2xf32, #tpu.memory_space<vmem>> -> memref<1x2xf32, #tpu.memory_space<vmem>>
    %13 = tpu.memref_slice %arg7[%c1_i32_4] : memref<8x!tpu.dma_semaphore, #tpu.memory_space<semaphore_mem>> -> memref<1x!tpu.dma_semaphore, #tpu.memory_space<semaphore_mem>>
    %14 = tpu.memref_squeeze %13 : memref<1x!tpu.dma_semaphore, #tpu.memory_space<semaphore_mem>> -> memref<!tpu.dma_semaphore, #tpu.memory_space<semaphore_mem>>
    tpu.enqueue_dma source(%11 : memref<1x2xf32, #tpu.memory_space<any>>) target(%12 : memref<1x2xf32, #tpu.memory_space<vmem>>) target_semaphore(%14 : memref<!tpu.dma_semaphore, #tpu.memory_space<semaphore_mem>>)
    %c2_i32 = arith.constant 2 : i32
    %15 = arith.addi %0, %c2_i32 : i32
    %16 = arith.index_cast %15 : i32 to index
    %17 = memref.load %arg1[%16] : memref<8xi32, #tpu.memory_space<smem>>
    %c2_i32_8 = arith.constant 2 : i32
    %c0_i32_9 = arith.constant 0 : i32
    %18 = tpu.memref_slice %arg4[%17, %c0_i32_9] : memref<10x2xf32, #tpu.memory_space<any>> -> memref<1x2xf32, #tpu.memory_space<any>>
    %c2_i32_10 = arith.constant 2 : i32
    %c0_i32_11 = arith.constant 0 : i32
    %19 = tpu.memref_slice %arg6[%c2_i32_10, %c0_i32_11] : memref<8x2xf32, #tpu.memory_space<vmem>> -> memref<1x2xf32, #tpu.memory_space<vmem>>
    %20 = tpu.memref_slice %arg7[%c2_i32_8] : memref<8x!tpu.dma_semaphore, #tpu.memory_space<semaphore_mem>> -> memref<1x!tpu.dma_semaphore, #tpu.memory_space<semaphore_mem>>
    %21 = tpu.memref_squeeze %20 : memref<1x!tpu.dma_semaphore, #tpu.memory_space<semaphore_mem>> -> memref<!tpu.dma_semaphore, #tpu.memory_space<semaphore_mem>>
    tpu.enqueue_dma source(%18 : memref<1x2xf32, #tpu.memory_space<any>>) target(%19 : memref<1x2xf32, #tpu.memory_space<vmem>>) target_semaphore(%21 : memref<!tpu.dma_semaphore, #tpu.memory_space<semaphore_mem>>)
    %c3_i32 = arith.constant 3 : i32
    %22 = arith.addi %0, %c3_i32 : i32
    %23 = arith.index_cast %22 : i32 to index
    %24 = memref.load %arg1[%23] : memref<8xi32, #tpu.memory_space<smem>>
    %c3_i32_12 = arith.constant 3 : i32
    %c0_i32_13 = arith.constant 0 : i32
    %25 = tpu.memref_slice %arg4[%24, %c0_i32_13] : memref<10x2xf32, #tpu.memory_space<any>> -> memref<1x2xf32, #tpu.memory_space<any>>
    %c3_i32_14 = arith.constant 3 : i32
    %c0_i32_15 = arith.constant 0 : i32
    %26 = tpu.memref_slice %arg6[%c3_i32_14, %c0_i32_15] : memref<8x2xf32, #tpu.memory_space<vmem>> -> memref<1x2xf32, #tpu.memory_space<vmem>>
    %27 = tpu.memref_slice %arg7[%c3_i32_12] : memref<8x!tpu.dma_semaphore, #tpu.memory_space<semaphore_mem>> -> memref<1x!tpu.dma_semaphore, #tpu.memory_space<semaphore_mem>>
    %28 = tpu.memref_squeeze %27 : memref<1x!tpu.dma_semaphore, #tpu.memory_space<semaphore_mem>> -> memref<!tpu.dma_semaphore, #tpu.memory_space<semaphore_mem>>
    tpu.enqueue_dma source(%25 : memref<1x2xf32, #tpu.memory_space<any>>) target(%26 : memref<1x2xf32, #tpu.memory_space<vmem>>) target_semaphore(%28 : memref<!tpu.dma_semaphore, #tpu.memory_space<semaphore_mem>>)
    %c4_i32 = arith.constant 4 : i32
    %29 = arith.addi %0, %c4_i32 : i32
    %30 = arith.index_cast %29 : i32 to index
    %31 = memref.load %arg1[%30] : memref<8xi32, #tpu.memory_space<smem>>
    %c4_i32_16 = arith.constant 4 : i32
    %c0_i32_17 = arith.constant 0 : i32
    %32 = tpu.memref_slice %arg4[%31, %c0_i32_17] : memref<10x2xf32, #tpu.memory_space<any>> -> memref<1x2xf32, #tpu.memory_space<any>>
    %c4_i32_18 = arith.constant 4 : i32
    %c0_i32_19 = arith.constant 0 : i32
    %33 = tpu.memref_slice %arg6[%c4_i32_18, %c0_i32_19] : memref<8x2xf32, #tpu.memory_space<vmem>> -> memref<1x2xf32, #tpu.memory_space<vmem>>
    %34 = tpu.memref_slice %arg7[%c4_i32_16] : memref<8x!tpu.dma_semaphore, #tpu.memory_space<semaphore_mem>> -> memref<1x!tpu.dma_semaphore, #tpu.memory_space<semaphore_mem>>
    %35 = tpu.memref_squeeze %34 : memref<1x!tpu.dma_semaphore, #tpu.memory_space<semaphore_mem>> -> memref<!tpu.dma_semaphore, #tpu.memory_space<semaphore_mem>>
    tpu.enqueue_dma source(%32 : memref<1x2xf32, #tpu.memory_space<any>>) target(%33 : memref<1x2xf32, #tpu.memory_space<vmem>>) target_semaphore(%35 : memref<!tpu.dma_semaphore, #tpu.memory_space<semaphore_mem>>)
    %c5_i32 = arith.constant 5 : i32
    %36 = arith.addi %0, %c5_i32 : i32
    %37 = arith.index_cast %36 : i32 to index
    %38 = memref.load %arg1[%37] : memref<8xi32, #tpu.memory_space<smem>>
    %c5_i32_20 = arith.constant 5 : i32
    %c0_i32_21 = arith.constant 0 : i32
    %39 = tpu.memref_slice %arg4[%38, %c0_i32_21] : memref<10x2xf32, #tpu.memory_space<any>> -> memref<1x2xf32, #tpu.memory_space<any>>
    %c5_i32_22 = arith.constant 5 : i32
    %c0_i32_23 = arith.constant 0 : i32
    %40 = tpu.memref_slice %arg6[%c5_i32_22, %c0_i32_23] : memref<8x2xf32, #tpu.memory_space<vmem>> -> memref<1x2xf32, #tpu.memory_space<vmem>>
    %41 = tpu.memref_slice %arg7[%c5_i32_20] : memref<8x!tpu.dma_semaphore, #tpu.memory_space<semaphore_mem>> -> memref<1x!tpu.dma_semaphore, #tpu.memory_space<semaphore_mem>>
    %42 = tpu.memref_squeeze %41 : memref<1x!tpu.dma_semaphore, #tpu.memory_space<semaphore_mem>> -> memref<!tpu.dma_semaphore, #tpu.memory_space<semaphore_mem>>
    tpu.enqueue_dma source(%39 : memref<1x2xf32, #tpu.memory_space<any>>) target(%40 : memref<1x2xf32, #tpu.memory_space<vmem>>) target_semaphore(%42 : memref<!tpu.dma_semaphore, #tpu.memory_space<semaphore_mem>>)
    %c6_i32 = arith.constant 6 : i32
    %43 = arith.addi %0, %c6_i32 : i32
    %44 = arith.index_cast %43 : i32 to index
    %45 = memref.load %arg1[%44] : memref<8xi32, #tpu.memory_space<smem>>
    %c6_i32_24 = arith.constant 6 : i32
    %c0_i32_25 = arith.constant 0 : i32
    %46 = tpu.memref_slice %arg4[%45, %c0_i32_25] : memref<10x2xf32, #tpu.memory_space<any>> -> memref<1x2xf32, #tpu.memory_space<any>>
    %c6_i32_26 = arith.constant 6 : i32
    %c0_i32_27 = arith.constant 0 : i32
    %47 = tpu.memref_slice %arg6[%c6_i32_26, %c0_i32_27] : memref<8x2xf32, #tpu.memory_space<vmem>> -> memref<1x2xf32, #tpu.memory_space<vmem>>
    %48 = tpu.memref_slice %arg7[%c6_i32_24] : memref<8x!tpu.dma_semaphore, #tpu.memory_space<semaphore_mem>> -> memref<1x!tpu.dma_semaphore, #tpu.memory_space<semaphore_mem>>
    %49 = tpu.memref_squeeze %48 : memref<1x!tpu.dma_semaphore, #tpu.memory_space<semaphore_mem>> -> memref<!tpu.dma_semaphore, #tpu.memory_space<semaphore_mem>>
    tpu.enqueue_dma source(%46 : memref<1x2xf32, #tpu.memory_space<any>>) target(%47 : memref<1x2xf32, #tpu.memory_space<vmem>>) target_semaphore(%49 : memref<!tpu.dma_semaphore, #tpu.memory_space<semaphore_mem>>)
    %c7_i32 = arith.constant 7 : i32
    %50 = arith.addi %0, %c7_i32 : i32
    %51 = arith.index_cast %50 : i32 to index
    %52 = memref.load %arg1[%51] : memref<8xi32, #tpu.memory_space<smem>>
    %c7_i32_28 = arith.constant 7 : i32
    %c0_i32_29 = arith.constant 0 : i32
    %53 = tpu.memref_slice %arg4[%52, %c0_i32_29] : memref<10x2xf32, #tpu.memory_space<any>> -> memref<1x2xf32, #tpu.memory_space<any>>
    %c7_i32_30 = arith.constant 7 : i32
    %c0_i32_31 = arith.constant 0 : i32
    %54 = tpu.memref_slice %arg6[%c7_i32_30, %c0_i32_31] : memref<8x2xf32, #tpu.memory_space<vmem>> -> memref<1x2xf32, #tpu.memory_space<vmem>>
    %55 = tpu.memref_slice %arg7[%c7_i32_28] : memref<8x!tpu.dma_semaphore, #tpu.memory_space<semaphore_mem>> -> memref<1x!tpu.dma_semaphore, #tpu.memory_space<semaphore_mem>>
    %56 = tpu.memref_squeeze %55 : memref<1x!tpu.dma_semaphore, #tpu.memory_space<semaphore_mem>> -> memref<!tpu.dma_semaphore, #tpu.memory_space<semaphore_mem>>
    tpu.enqueue_dma source(%53 : memref<1x2xf32, #tpu.memory_space<any>>) target(%54 : memref<1x2xf32, #tpu.memory_space<vmem>>) target_semaphore(%56 : memref<!tpu.dma_semaphore, #tpu.memory_space<semaphore_mem>>)
    %c0_i32_32 = arith.constant 0 : i32
    %c0_i32_33 = arith.constant 0 : i32
    %57 = tpu.memref_slice %arg4[%3, %c0_i32_33] : memref<10x2xf32, #tpu.memory_space<any>> -> memref<1x2xf32, #tpu.memory_space<any>>
    %c0_i32_34 = arith.constant 0 : i32
    %c0_i32_35 = arith.constant 0 : i32
    %58 = tpu.memref_slice %arg6[%c0_i32_34, %c0_i32_35] : memref<8x2xf32, #tpu.memory_space<vmem>> -> memref<1x2xf32, #tpu.memory_space<vmem>>
    %59 = tpu.memref_slice %arg7[%c0_i32_32] : memref<8x!tpu.dma_semaphore, #tpu.memory_space<semaphore_mem>> -> memref<1x!tpu.dma_semaphore, #tpu.memory_space<semaphore_mem>>
    %60 = tpu.memref_squeeze %59 : memref<1x!tpu.dma_semaphore, #tpu.memory_space<semaphore_mem>> -> memref<!tpu.dma_semaphore, #tpu.memory_space<semaphore_mem>>
    tpu.wait_dma2 semaphore(%60 : memref<!tpu.dma_semaphore, #tpu.memory_space<semaphore_mem>>) src(%57 : memref<1x2xf32, #tpu.memory_space<any>>) dst(%58 : memref<1x2xf32, #tpu.memory_space<vmem>>)
    %c1_i32_36 = arith.constant 1 : i32
    %c0_i32_37 = arith.constant 0 : i32
    %61 = tpu.memref_slice %arg4[%10, %c0_i32_37] : memref<10x2xf32, #tpu.memory_space<any>> -> memref<1x2xf32, #tpu.memory_space<any>>
    %c1_i32_38 = arith.constant 1 : i32
    %c0_i32_39 = arith.constant 0 : i32
    %62 = tpu.memref_slice %arg6[%c1_i32_38, %c0_i32_39] : memref<8x2xf32, #tpu.memory_space<vmem>> -> memref<1x2xf32, #tpu.memory_space<vmem>>
    %63 = tpu.memref_slice %arg7[%c1_i32_36] : memref<8x!tpu.dma_semaphore, #tpu.memory_space<semaphore_mem>> -> memref<1x!tpu.dma_semaphore, #tpu.memory_space<semaphore_mem>>
    %64 = tpu.memref_squeeze %63 : memref<1x!tpu.dma_semaphore, #tpu.memory_space<semaphore_mem>> -> memref<!tpu.dma_semaphore, #tpu.memory_space<semaphore_mem>>
    tpu.wait_dma2 semaphore(%64 : memref<!tpu.dma_semaphore, #tpu.memory_space<semaphore_mem>>) src(%61 : memref<1x2xf32, #tpu.memory_space<any>>) dst(%62 : memref<1x2xf32, #tpu.memory_space<vmem>>)
    %c2_i32_40 = arith.constant 2 : i32
    %c0_i32_41 = arith.constant 0 : i32
    %65 = tpu.memref_slice %arg4[%17, %c0_i32_41] : memref<10x2xf32, #tpu.memory_space<any>> -> memref<1x2xf32, #tpu.memory_space<any>>
    %c2_i32_42 = arith.constant 2 : i32
    %c0_i32_43 = arith.constant 0 : i32
    %66 = tpu.memref_slice %arg6[%c2_i32_42, %c0_i32_43] : memref<8x2xf32, #tpu.memory_space<vmem>> -> memref<1x2xf32, #tpu.memory_space<vmem>>
    %67 = tpu.memref_slice %arg7[%c2_i32_40] : memref<8x!tpu.dma_semaphore, #tpu.memory_space<semaphore_mem>> -> memref<1x!tpu.dma_semaphore, #tpu.memory_space<semaphore_mem>>
    %68 = tpu.memref_squeeze %67 : memref<1x!tpu.dma_semaphore, #tpu.memory_space<semaphore_mem>> -> memref<!tpu.dma_semaphore, #tpu.memory_space<semaphore_mem>>
    tpu.wait_dma2 semaphore(%68 : memref<!tpu.dma_semaphore, #tpu.memory_space<semaphore_mem>>) src(%65 : memref<1x2xf32, #tpu.memory_space<any>>) dst(%66 : memref<1x2xf32, #tpu.memory_space<vmem>>)
    %c3_i32_44 = arith.constant 3 : i32
    %c0_i32_45 = arith.constant 0 : i32
    %69 = tpu.memref_slice %arg4[%24, %c0_i32_45] : memref<10x2xf32, #tpu.memory_space<any>> -> memref<1x2xf32, #tpu.memory_space<any>>
    %c3_i32_46 = arith.constant 3 : i32
    %c0_i32_47 = arith.constant 0 : i32
    %70 = tpu.memref_slice %arg6[%c3_i32_46, %c0_i32_47] : memref<8x2xf32, #tpu.memory_space<vmem>> -> memref<1x2xf32, #tpu.memory_space<vmem>>
    %71 = tpu.memref_slice %arg7[%c3_i32_44] : memref<8x!tpu.dma_semaphore, #tpu.memory_space<semaphore_mem>> -> memref<1x!tpu.dma_semaphore, #tpu.memory_space<semaphore_mem>>
    %72 = tpu.memref_squeeze %71 : memref<1x!tpu.dma_semaphore, #tpu.memory_space<semaphore_mem>> -> memref<!tpu.dma_semaphore, #tpu.memory_space<semaphore_mem>>
    tpu.wait_dma2 semaphore(%72 : memref<!tpu.dma_semaphore, #tpu.memory_space<semaphore_mem>>) src(%69 : memref<1x2xf32, #tpu.memory_space<any>>) dst(%70 : memref<1x2xf32, #tpu.memory_space<vmem>>)
    %c4_i32_48 = arith.constant 4 : i32
    %c0_i32_49 = arith.constant 0 : i32
    %73 = tpu.memref_slice %arg4[%31, %c0_i32_49] : memref<10x2xf32, #tpu.memory_space<any>> -> memref<1x2xf32, #tpu.memory_space<any>>
    %c4_i32_50 = arith.constant 4 : i32
    %c0_i32_51 = arith.constant 0 : i32
    %74 = tpu.memref_slice %arg6[%c4_i32_50, %c0_i32_51] : memref<8x2xf32, #tpu.memory_space<vmem>> -> memref<1x2xf32, #tpu.memory_space<vmem>>
    %75 = tpu.memref_slice %arg7[%c4_i32_48] : memref<8x!tpu.dma_semaphore, #tpu.memory_space<semaphore_mem>> -> memref<1x!tpu.dma_semaphore, #tpu.memory_space<semaphore_mem>>
    %76 = tpu.memref_squeeze %75 : memref<1x!tpu.dma_semaphore, #tpu.memory_space<semaphore_mem>> -> memref<!tpu.dma_semaphore, #tpu.memory_space<semaphore_mem>>
    tpu.wait_dma2 semaphore(%76 : memref<!tpu.dma_semaphore, #tpu.memory_space<semaphore_mem>>) src(%73 : memref<1x2xf32, #tpu.memory_space<any>>) dst(%74 : memref<1x2xf32, #tpu.memory_space<vmem>>)
    %c5_i32_52 = arith.constant 5 : i32
    %c0_i32_53 = arith.constant 0 : i32
    %77 = tpu.memref_slice %arg4[%38, %c0_i32_53] : memref<10x2xf32, #tpu.memory_space<any>> -> memref<1x2xf32, #tpu.memory_space<any>>
    %c5_i32_54 = arith.constant 5 : i32
    %c0_i32_55 = arith.constant 0 : i32
    %78 = tpu.memref_slice %arg6[%c5_i32_54, %c0_i32_55] : memref<8x2xf32, #tpu.memory_space<vmem>> -> memref<1x2xf32, #tpu.memory_space<vmem>>
    %79 = tpu.memref_slice %arg7[%c5_i32_52] : memref<8x!tpu.dma_semaphore, #tpu.memory_space<semaphore_mem>> -> memref<1x!tpu.dma_semaphore, #tpu.memory_space<semaphore_mem>>
    %80 = tpu.memref_squeeze %79 : memref<1x!tpu.dma_semaphore, #tpu.memory_space<semaphore_mem>> -> memref<!tpu.dma_semaphore, #tpu.memory_space<semaphore_mem>>
    tpu.wait_dma2 semaphore(%80 : memref<!tpu.dma_semaphore, #tpu.memory_space<semaphore_mem>>) src(%77 : memref<1x2xf32, #tpu.memory_space<any>>) dst(%78 : memref<1x2xf32, #tpu.memory_space<vmem>>)
    %c6_i32_56 = arith.constant 6 : i32
    %c0_i32_57 = arith.constant 0 : i32
    %81 = tpu.memref_slice %arg4[%45, %c0_i32_57] : memref<10x2xf32, #tpu.memory_space<any>> -> memref<1x2xf32, #tpu.memory_space<any>>
    %c6_i32_58 = arith.constant 6 : i32
    %c0_i32_59 = arith.constant 0 : i32
    %82 = tpu.memref_slice %arg6[%c6_i32_58, %c0_i32_59] : memref<8x2xf32, #tpu.memory_space<vmem>> -> memref<1x2xf32, #tpu.memory_space<vmem>>
    %83 = tpu.memref_slice %arg7[%c6_i32_56] : memref<8x!tpu.dma_semaphore, #tpu.memory_space<semaphore_mem>> -> memref<1x!tpu.dma_semaphore, #tpu.memory_space<semaphore_mem>>
    %84 = tpu.memref_squeeze %83 : memref<1x!tpu.dma_semaphore, #tpu.memory_space<semaphore_mem>> -> memref<!tpu.dma_semaphore, #tpu.memory_space<semaphore_mem>>
    tpu.wait_dma2 semaphore(%84 : memref<!tpu.dma_semaphore, #tpu.memory_space<semaphore_mem>>) src(%81 : memref<1x2xf32, #tpu.memory_space<any>>) dst(%82 : memref<1x2xf32, #tpu.memory_space<vmem>>)
    %c7_i32_60 = arith.constant 7 : i32
    %c0_i32_61 = arith.constant 0 : i32
    %85 = tpu.memref_slice %arg4[%52, %c0_i32_61] : memref<10x2xf32, #tpu.memory_space<any>> -> memref<1x2xf32, #tpu.memory_space<any>>
    %c7_i32_62 = arith.constant 7 : i32
    %c0_i32_63 = arith.constant 0 : i32
    %86 = tpu.memref_slice %arg6[%c7_i32_62, %c0_i32_63] : memref<8x2xf32, #tpu.memory_space<vmem>> -> memref<1x2xf32, #tpu.memory_space<vmem>>
    %87 = tpu.memref_slice %arg7[%c7_i32_60] : memref<8x!tpu.dma_semaphore, #tpu.memory_space<semaphore_mem>> -> memref<1x!tpu.dma_semaphore, #tpu.memory_space<semaphore_mem>>
    %88 = tpu.memref_squeeze %87 : memref<1x!tpu.dma_semaphore, #tpu.memory_space<semaphore_mem>> -> memref<!tpu.dma_semaphore, #tpu.memory_space<semaphore_mem>>
    tpu.wait_dma2 semaphore(%88 : memref<!tpu.dma_semaphore, #tpu.memory_space<semaphore_mem>>) src(%85 : memref<1x2xf32, #tpu.memory_space<any>>) dst(%86 : memref<1x2xf32, #tpu.memory_space<vmem>>)
    %c0 = arith.constant 0 : index
    %c0_64 = arith.constant 0 : index
    %89 = vector.load %arg2[%c0, %c0_64] : memref<8x2xf32, #tpu.memory_space<vmem>>, vector<8x2xf32>
    %c0_65 = arith.constant 0 : index
    %c0_66 = arith.constant 0 : index
    %90 = vector.load %arg6[%c0_65, %c0_66] : memref<8x2xf32, #tpu.memory_space<vmem>>, vector<8x2xf32>
    %91 = arith.subf %89, %90 : vector<8x2xf32>
    %92 = arith.mulf %91, %91 : vector<8x2xf32>
    %cst = arith.constant dense<0.000000e+00> : vector<8xf32>
    %93 = vector.multi_reduction <add>, %92, %cst [1] : vector<8x2xf32> to vector<8xf32>
    %94 = vector.shape_cast %93 : vector<8xf32> to vector<8x1xf32>
    %c0_67 = arith.constant 0 : index
    %c0_68 = arith.constant 0 : index
    %95 = vector.load %arg3[%c0_67, %c0_68] : memref<8x1xf32, #tpu.memory_space<vmem>>, vector<8x1xf32>
    %96 = arith.mulf %94, %95 : vector<8x1xf32>
    %c0_69 = arith.constant 0 : index
    %c0_70 = arith.constant 0 : index
    %97 = vector.load %arg5[%c0_69, %c0_70] : memref<8x1xf32, #tpu.memory_space<vmem>>, vector<8x1xf32>
    tpu.vector_store %arg5[%c0_69, %c0_70], %96 {strides = array<i32>} : memref<8x1xf32, #tpu.memory_space<vmem>>, vector<8x1xf32>,
    return
  }
  func.func @transform_0(%arg0: i32, %arg1: memref<8xi32, #tpu.memory_space<smem>>) -> (i32, i32) {
    %c0_i32 = arith.constant 0 : i32
    %c0_i32_0 = arith.constant 0 : i32
    return %arg0, %c0_i32 : i32, i32
  }
  func.func @transform_1(%arg0: i32, %arg1: memref<8xi32, #tpu.memory_space<smem>>) -> (i32, i32) {
    %c0_i32 = arith.constant 0 : i32
    %c0_i32_0 = arith.constant 0 : i32
    return %arg0, %c0_i32 : i32, i32
  }
  func.func @transform_3(%arg0: i32, %arg1: memref<8xi32, #tpu.memory_space<smem>>) -> (i32, i32) {
    %c0_i32 = arith.constant 0 : i32
    %c0_i32_0 = arith.constant 0 : i32
    return %arg0, %c0_i32 : i32, i32
  }
}

</mosaic_0001>

<llo_original>
// kernel: tpu_custom_call.1
$region0: #{tpu_custom_call.1}
  #allocation0 [shape = 'u32[]', space=smem, size = 0x4, offset = 0x4, fixed_abs, tag = 'smem constant byte address 0x4 - core index']
  #allocation1 [shape = 'u32[144,128]{1,0:T(1,128)}', space=vmem, size = 0x12000, scoped, tag = 'internal scratch']
  #allocation2 [shape = 'f32[8,2]{1,0:T(8,128)}', space=vmem, size = 0x1000, scoped, tag = 'scratch operand']
  #allocation3 [shape = 's32[8]{0}', space=sflag, size = 0x20, scoped, tag = 'scratch operand']
  #allocation4 [shape = 's32[1]{0}', space=sflag, size = 0x4, scoped, tag = 'scoped memory for tpu_custom_call.1']
  #allocation5 [shape = 'u8[512]{0}', space=smem, size = 0x200, scoped, tag = 'prefetched SMEM operand 0']
  #allocation6 [shape = 's32[]', space=sflag, size = 0x4, offset = 0, fixed_abs, tag = 'sflag constant byte address 0x0 - dummy sync flag']
  #allocation7 [shape = 's32[]', space=sflag, size = 0x4, offset = 0, fixed_abs, tag = 'sflag constant byte address 0x0 - dummy sync flag']
  #allocation8 [shape = 's32[]', space=sflag, size = 0x4, offset = 0, fixed_abs, tag = 'sflag constant byte address 0x0 - dummy sync flag']
  #allocation9 [shape = 's32[]', space=sflag, size = 0x4, offset = 0, fixed_abs, tag = 'sflag constant byte address 0x0 - dummy sync flag']
  #allocation10 [shape = 's32[]', space=sflag, size = 0x4, offset = 0, fixed_abs, tag = 'sflag constant byte address 0x0 - dummy sync flag']
  #allocation11 [shape = 's32[]', space=sflag, size = 0x4, offset = 0, fixed_abs, tag = 'sflag constant byte address 0x0 - dummy sync flag']
  #allocation12 [shape = 's32[]', space=sflag, size = 0x4, offset = 0, fixed_abs, tag = 'sflag constant byte address 0x0 - dummy sync flag']
  #allocation13 [shape = 's32[]', space=sflag, size = 0x4, offset = 0, fixed_abs, tag = 'sflag constant byte address 0x0 - dummy sync flag']
  %s0 = inlined_call_operand.vmem [shape: s32[8], index: 0, kind: input, shape index: {}]
  %s1 = inlined_call_operand.vmem [shape: f32[8,2], index: 1, kind: input, shape index: {}]
  %s2 = inlined_call_operand.vmem [shape: f32[8,1], index: 2, kind: input, shape index: {}]
  %s3 = inlined_call_operand.vmem [shape: f32[10,2], index: 3, kind: input, shape index: {}]
  %s4 = inlined_call_operand.vmem [shape: f32[8,1], index: 4, kind: output, shape index: {}]
  %s5 = sld [smem:[#allocation0]]
  $region258: #{tpu_custom_call.1} parent=0
    _
  %s7 = ssub.s32 1, %s5
  %s8 = scalar_select 0, %s7, %s5
  %s9 = sshll.u32 %s0, 4
  %s10 = int_to_ptr.vmem [resolvable:$true] %s9
  %12 = dma.vmem_to_smem %s10, 16, [#allocation5], [#allocation4]
  %13 = dma.done [#allocation4], 16
  %14 = sfence
  // Predicated region
  $region2: #{tpu_custom_call.1} parent=0 // pred_check
    _
  $region3: #{tpu_custom_call.1} parent=0 // pred_check_branch
    %16 = sbr.rel (0) target = $region5
  $region4: #{tpu_custom_call.1} parent=0 // pred_region
    _
  $region5: #{tpu_custom_call.1} parent=0 // pred_fallthru
    _
  // Predicated region
  $region6: #{tpu_custom_call.1} parent=0 // pred_check
    _
  $region7: #{tpu_custom_call.1} parent=0 // pred_check_branch
    %18 = sbr.rel (0) target = $region9
  $region8: #{tpu_custom_call.1} parent=0 // pred_region
    _
  $region9: #{tpu_custom_call.1} parent=0 // pred_fallthru
    _
  %s19 = smul.u32 0, 8
  %s20 = sld [smem:[#allocation5 + %s19]]
  %s21 = scalar_lea.vmem %s3, %s20
  %p23 = scmp.lt.u32.totalorder 1, 8
  %p24 = pneg %p23
  // Predicated region
  $region10: #{tpu_custom_call.1} parent=0 // pred_check
    _
  $region11: #{tpu_custom_call.1} parent=0 // pred_check_branch
    %26 = sbr.rel (%p23) target = $region13
  $region12: #{tpu_custom_call.1} parent=0 // pred_region
    %s41 = sand.u32 1, 7
    %p42 = scmp.eq.s32.totalorder %s41, 0
    %p43 = pneg %p42
    // Predicated region
    $region25: #{tpu_custom_call.1} parent=12 // pred_check
      _
    $region26: #{tpu_custom_call.1} parent=12 // pred_check_branch
      %45 = sbr.rel (%p42) target = $region28
    $region27: #{tpu_custom_call.1} parent=12 // pred_region
      %s46 = sand.u32 1, 7
      %s47 = ssub.s32 1, %s46
      %s48 = scalar_lea.vmem %s21, %s47
      %s49 = ssub.s32 1, %s46
      %s50 = scalar_lea.vmem [#allocation2], %s49
      %s51 = sshllo.u32 0, %s46
      loop: start=0, step=1, limit=1
      $region29: #{tpu_custom_call.1} parent=27 // loop_pre_header
        _
      $region30: #{tpu_custom_call.1} parent=27 // loop_header
        %s53 = sphi 0, %s57
        %p54 = scmp.ge.s32.totalorder %s53, 1
        %s58 = sphi %s48, %s48
        %s59 = sphi %s50, %s50
      $region31: #{tpu_custom_call.1} parent=27 // loop_header_branch
        %56 = sbr.rel (%p54) target = $region35
      $region32: #{tpu_custom_call.1} parent=27 // loop_body
        %v60 = vld [vmem:[%s58] sm:%s51]
        %61 = vst [vmem:[%s59] sm:%s51] %v60
      $region33: #{tpu_custom_call.1} parent=27 // loop_footer
        %s57 = sadd.s32 1, %s53
      $region34: #{tpu_custom_call.1} parent=27 // loop_footer_branch
        %52 = sbr.rel target = $region30
      $region35: #{tpu_custom_call.1} parent=27 // loop_exit
        _
    $region28: #{tpu_custom_call.1} parent=12 // pred_fallthru
      _
  $region13: #{tpu_custom_call.1} parent=0 // pred_fallthru
    _
  // Predicated region
  $region14: #{tpu_custom_call.1} parent=0 // pred_check
    %p27 = pneg %p23
  $region15: #{tpu_custom_call.1} parent=0 // pred_check_branch
    %29 = sbr.rel (%p27) target = $region17
  $region16: #{tpu_custom_call.1} parent=0 // pred_region
    %s30 = sshllo.u32 0, 1
    loop: start=0, step=1, limit=1
    $region18: #{tpu_custom_call.1} parent=16 // loop_pre_header
      _
    $region19: #{tpu_custom_call.1} parent=16 // loop_header
      %s32 = sphi 0, %s36
      %p33 = scmp.ge.s32.totalorder %s32, 1
      %s37 = sphi %s21, %s21
      %s38 = sphi [#allocation2], [#allocation2]
    $region20: #{tpu_custom_call.1} parent=16 // loop_header_branch
      %35 = sbr.rel (%p33) target = $region24
    $region21: #{tpu_custom_call.1} parent=16 // loop_body
      %v39 = vld [vmem:[%s37] sm:%s30]
      %40 = vst [vmem:[%s38] sm:%s30] %v39
    $region22: #{tpu_custom_call.1} parent=16 // loop_footer
      %s36 = sadd.s32 1, %s32
    $region23: #{tpu_custom_call.1} parent=16 // loop_footer_branch
      %31 = sbr.rel target = $region19
    $region24: #{tpu_custom_call.1} parent=16 // loop_exit
      _
  $region17: #{tpu_custom_call.1} parent=0 // pred_fallthru
    _
  // Predicated region
  $region36: #{tpu_custom_call.1} parent=0 // pred_check
    _
  $region37: #{tpu_custom_call.1} parent=0 // pred_check_branch
    %64 = sbr.rel (0) target = $region39
  $region38: #{tpu_custom_call.1} parent=0 // pred_region
    %65 = vsyncadd [#allocation3], 16
  $region39: #{tpu_custom_call.1} parent=0 // pred_fallthru
    _
  %s66 = sadd.s32 %s19, 1
  %s67 = sld [smem:[#allocation5 + %s66]]
  %s68 = scalar_lea.vmem %s3, %s67
  %s69 = scalar_lea.vmem [#allocation2], 1
  %s70 = scalar_lea.sflag [#allocation3], 1
  %p72 = scmp.lt.u32.totalorder 1, 8
  %p73 = pneg %p72
  // Predicated region
  $region40: #{tpu_custom_call.1} parent=0 // pred_check
    _
  $region41: #{tpu_custom_call.1} parent=0 // pred_check_branch
    %75 = sbr.rel (%p72) target = $region43
  $region42: #{tpu_custom_call.1} parent=0 // pred_region
    %s90 = sand.u32 1, 7
    %p91 = scmp.eq.s32.totalorder %s90, 0
    %p92 = pneg %p91
    // Predicated region
    $region55: #{tpu_custom_call.1} parent=42 // pred_check
      _
    $region56: #{tpu_custom_call.1} parent=42 // pred_check_branch
      %94 = sbr.rel (%p91) target = $region58
    $region57: #{tpu_custom_call.1} parent=42 // pred_region
      %s95 = sand.u32 1, 7
      %s96 = ssub.s32 1, %s95
      %s97 = scalar_lea.vmem %s68, %s96
      %s98 = ssub.s32 1, %s95
      %s99 = scalar_lea.vmem %s69, %s98 [#allocation2]
      %s100 = sshllo.u32 0, %s95
      loop: start=0, step=1, limit=1
      $region59: #{tpu_custom_call.1} parent=57 // loop_pre_header
        _
      $region60: #{tpu_custom_call.1} parent=57 // loop_header
        %s102 = sphi 0, %s106
        %p103 = scmp.ge.s32.totalorder %s102, 1
        %s107 = sphi %s97, %s97
        %s108 = sphi %s99, %s99
      $region61: #{tpu_custom_call.1} parent=57 // loop_header_branch
        %105 = sbr.rel (%p103) target = $region65
      $region62: #{tpu_custom_call.1} parent=57 // loop_body
        %v109 = vld [vmem:[%s107] sm:%s100]
        %110 = vst [vmem:[%s108] sm:%s100] %v109
      $region63: #{tpu_custom_call.1} parent=57 // loop_footer
        %s106 = sadd.s32 1, %s102
      $region64: #{tpu_custom_call.1} parent=57 // loop_footer_branch
        %101 = sbr.rel target = $region60
      $region65: #{tpu_custom_call.1} parent=57 // loop_exit
        _
    $region58: #{tpu_custom_call.1} parent=42 // pred_fallthru
      _
  $region43: #{tpu_custom_call.1} parent=0 // pred_fallthru
    _
  // Predicated region
  $region44: #{tpu_custom_call.1} parent=0 // pred_check
    %p76 = pneg %p72
  $region45: #{tpu_custom_call.1} parent=0 // pred_check_branch
    %78 = sbr.rel (%p76) target = $region47
  $region46: #{tpu_custom_call.1} parent=0 // pred_region
    %s79 = sshllo.u32 0, 1
    loop: start=0, step=1, limit=1
    $region48: #{tpu_custom_call.1} parent=46 // loop_pre_header
      _
    $region49: #{tpu_custom_call.1} parent=46 // loop_header
      %s81 = sphi 0, %s85
      %p82 = scmp.ge.s32.totalorder %s81, 1
      %s86 = sphi %s68, %s68
      %s87 = sphi %s69, %s69
    $region50: #{tpu_custom_call.1} parent=46 // loop_header_branch
      %84 = sbr.rel (%p82) target = $region54
    $region51: #{tpu_custom_call.1} parent=46 // loop_body
      %v88 = vld [vmem:[%s86] sm:%s79]
      %89 = vst [vmem:[%s87] sm:%s79] %v88
    $region52: #{tpu_custom_call.1} parent=46 // loop_footer
      %s85 = sadd.s32 1, %s81
    $region53: #{tpu_custom_call.1} parent=46 // loop_footer_branch
      %80 = sbr.rel target = $region49
    $region54: #{tpu_custom_call.1} parent=46 // loop_exit
      _
  $region47: #{tpu_custom_call.1} parent=0 // pred_fallthru
    _
  // Predicated region
  $region66: #{tpu_custom_call.1} parent=0 // pred_check
    _
  $region67: #{tpu_custom_call.1} parent=0 // pred_check_branch
    %113 = sbr.rel (0) target = $region69
  $region68: #{tpu_custom_call.1} parent=0 // pred_region
    %114 = vsyncadd %s70, 16
  $region69: #{tpu_custom_call.1} parent=0 // pred_fallthru
    _
  %s115 = sadd.s32 %s19, 2
  %s116 = sld [smem:[#allocation5 + %s115]]
  %s117 = scalar_lea.vmem %s3, %s116
  %s118 = scalar_lea.vmem [#allocation2], 2
  %s119 = scalar_lea.sflag [#allocation3], 2
  %p121 = scmp.lt.u32.totalorder 1, 8
  %p122 = pneg %p121
  // Predicated region
  $region70: #{tpu_custom_call.1} parent=0 // pred_check
    _
  $region71: #{tpu_custom_call.1} parent=0 // pred_check_branch
    %124 = sbr.rel (%p121) target = $region73
  $region72: #{tpu_custom_call.1} parent=0 // pred_region
    %s139 = sand.u32 1, 7
    %p140 = scmp.eq.s32.totalorder %s139, 0
    %p141 = pneg %p140
    // Predicated region
    $region85: #{tpu_custom_call.1} parent=72 // pred_check
      _
    $region86: #{tpu_custom_call.1} parent=72 // pred_check_branch
      %143 = sbr.rel (%p140) target = $region88
    $region87: #{tpu_custom_call.1} parent=72 // pred_region
      %s144 = sand.u32 1, 7
      %s145 = ssub.s32 1, %s144
      %s146 = scalar_lea.vmem %s117, %s145
      %s147 = ssub.s32 1, %s144
      %s148 = scalar_lea.vmem %s118, %s147 [#allocation2]
      %s149 = sshllo.u32 0, %s144
      loop: start=0, step=1, limit=1
      $region89: #{tpu_custom_call.1} parent=87 // loop_pre_header
        _
      $region90: #{tpu_custom_call.1} parent=87 // loop_header
        %s151 = sphi 0, %s155
        %p152 = scmp.ge.s32.totalorder %s151, 1
        %s156 = sphi %s146, %s146
        %s157 = sphi %s148, %s148
      $region91: #{tpu_custom_call.1} parent=87 // loop_header_branch
        %154 = sbr.rel (%p152) target = $region95
      $region92: #{tpu_custom_call.1} parent=87 // loop_body
        %v158 = vld [vmem:[%s156] sm:%s149]
        %159 = vst [vmem:[%s157] sm:%s149] %v158
      $region93: #{tpu_custom_call.1} parent=87 // loop_footer
        %s155 = sadd.s32 1, %s151
      $region94: #{tpu_custom_call.1} parent=87 // loop_footer_branch
        %150 = sbr.rel target = $region90
      $region95: #{tpu_custom_call.1} parent=87 // loop_exit
        _
    $region88: #{tpu_custom_call.1} parent=72 // pred_fallthru
      _
  $region73: #{tpu_custom_call.1} parent=0 // pred_fallthru
    _
  // Predicated region
  $region74: #{tpu_custom_call.1} parent=0 // pred_check
    %p125 = pneg %p121
  $region75: #{tpu_custom_call.1} parent=0 // pred_check_branch
    %127 = sbr.rel (%p125) target = $region77
  $region76: #{tpu_custom_call.1} parent=0 // pred_region
    %s128 = sshllo.u32 0, 1
    loop: start=0, step=1, limit=1
    $region78: #{tpu_custom_call.1} parent=76 // loop_pre_header
      _
    $region79: #{tpu_custom_call.1} parent=76 // loop_header
      %s130 = sphi 0, %s134
      %p131 = scmp.ge.s32.totalorder %s130, 1
      %s135 = sphi %s117, %s117
      %s136 = sphi %s118, %s118
    $region80: #{tpu_custom_call.1} parent=76 // loop_header_branch
      %133 = sbr.rel (%p131) target = $region84
    $region81: #{tpu_custom_call.1} parent=76 // loop_body
      %v137 = vld [vmem:[%s135] sm:%s128]
      %138 = vst [vmem:[%s136] sm:%s128] %v137
    $region82: #{tpu_custom_call.1} parent=76 // loop_footer
      %s134 = sadd.s32 1, %s130
    $region83: #{tpu_custom_call.1} parent=76 // loop_footer_branch
      %129 = sbr.rel target = $region79
    $region84: #{tpu_custom_call.1} parent=76 // loop_exit
      _
  $region77: #{tpu_custom_call.1} parent=0 // pred_fallthru
    _
  // Predicated region
  $region96: #{tpu_custom_call.1} parent=0 // pred_check
    _
  $region97: #{tpu_custom_call.1} parent=0 // pred_check_branch
    %162 = sbr.rel (0) target = $region99
  $region98: #{tpu_custom_call.1} parent=0 // pred_region
    %163 = vsyncadd %s119, 16
  $region99: #{tpu_custom_call.1} parent=0 // pred_fallthru
    _
  %s164 = sadd.s32 %s19, 3
  %s165 = sld [smem:[#allocation5 + %s164]]
  %s166 = scalar_lea.vmem %s3, %s165
  %s167 = scalar_lea.vmem [#allocation2], 3
  %s168 = scalar_lea.sflag [#allocation3], 3
  %p170 = scmp.lt.u32.totalorder 1, 8
  %p171 = pneg %p170
  // Predicated region
  $region100: #{tpu_custom_call.1} parent=0 // pred_check
    _
  $region101: #{tpu_custom_call.1} parent=0 // pred_check_branch
    %173 = sbr.rel (%p170) target = $region103
  $region102: #{tpu_custom_call.1} parent=0 // pred_region
    %s188 = sand.u32 1, 7
    %p189 = scmp.eq.s32.totalorder %s188, 0
    %p190 = pneg %p189
    // Predicated region
    $region115: #{tpu_custom_call.1} parent=102 // pred_check
      _
    $region116: #{tpu_custom_call.1} parent=102 // pred_check_branch
      %192 = sbr.rel (%p189) target = $region118
    $region117: #{tpu_custom_call.1} parent=102 // pred_region
      %s193 = sand.u32 1, 7
      %s194 = ssub.s32 1, %s193
      %s195 = scalar_lea.vmem %s166, %s194
      %s196 = ssub.s32 1, %s193
      %s197 = scalar_lea.vmem %s167, %s196 [#allocation2]
      %s198 = sshllo.u32 0, %s193
      loop: start=0, step=1, limit=1
      $region119: #{tpu_custom_call.1} parent=117 // loop_pre_header
        _
      $region120: #{tpu_custom_call.1} parent=117 // loop_header
        %s200 = sphi 0, %s204
        %p201 = scmp.ge.s32.totalorder %s200, 1
        %s205 = sphi %s195, %s195
        %s206 = sphi %s197, %s197
      $region121: #{tpu_custom_call.1} parent=117 // loop_header_branch
        %203 = sbr.rel (%p201) target = $region125
      $region122: #{tpu_custom_call.1} parent=117 // loop_body
        %v207 = vld [vmem:[%s205] sm:%s198]
        %208 = vst [vmem:[%s206] sm:%s198] %v207
      $region123: #{tpu_custom_call.1} parent=117 // loop_footer
        %s204 = sadd.s32 1, %s200
      $region124: #{tpu_custom_call.1} parent=117 // loop_footer_branch
        %199 = sbr.rel target = $region120
      $region125: #{tpu_custom_call.1} parent=117 // loop_exit
        _
    $region118: #{tpu_custom_call.1} parent=102 // pred_fallthru
      _
  $region103: #{tpu_custom_call.1} parent=0 // pred_fallthru
    _
  // Predicated region
  $region104: #{tpu_custom_call.1} parent=0 // pred_check
    %p174 = pneg %p170
  $region105: #{tpu_custom_call.1} parent=0 // pred_check_branch
    %176 = sbr.rel (%p174) target = $region107
  $region106: #{tpu_custom_call.1} parent=0 // pred_region
    %s177 = sshllo.u32 0, 1
    loop: start=0, step=1, limit=1
    $region108: #{tpu_custom_call.1} parent=106 // loop_pre_header
      _
    $region109: #{tpu_custom_call.1} parent=106 // loop_header
      %s179 = sphi 0, %s183
      %p180 = scmp.ge.s32.totalorder %s179, 1
      %s184 = sphi %s166, %s166
      %s185 = sphi %s167, %s167
    $region110: #{tpu_custom_call.1} parent=106 // loop_header_branch
      %182 = sbr.rel (%p180) target = $region114
    $region111: #{tpu_custom_call.1} parent=106 // loop_body
      %v186 = vld [vmem:[%s184] sm:%s177]
      %187 = vst [vmem:[%s185] sm:%s177] %v186
    $region112: #{tpu_custom_call.1} parent=106 // loop_footer
      %s183 = sadd.s32 1, %s179
    $region113: #{tpu_custom_call.1} parent=106 // loop_footer_branch
      %178 = sbr.rel target = $region109
    $region114: #{tpu_custom_call.1} parent=106 // loop_exit
      _
  $region107: #{tpu_custom_call.1} parent=0 // pred_fallthru
    _
  // Predicated region
  $region126: #{tpu_custom_call.1} parent=0 // pred_check
    _
  $region127: #{tpu_custom_call.1} parent=0 // pred_check_branch
    %211 = sbr.rel (0) target = $region129
  $region128: #{tpu_custom_call.1} parent=0 // pred_region
    %212 = vsyncadd %s168, 16
  $region129: #{tpu_custom_call.1} parent=0 // pred_fallthru
    _
  %s213 = sadd.s32 %s19, 4
  %s214 = sld [smem:[#allocation5 + %s213]]
  %s215 = scalar_lea.vmem %s3, %s214
  %s216 = scalar_lea.vmem [#allocation2], 4
  %s217 = scalar_lea.sflag [#allocation3], 4
  %p219 = scmp.lt.u32.totalorder 1, 8
  %p220 = pneg %p219
  // Predicated region
  $region130: #{tpu_custom_call.1} parent=0 // pred_check
    _
  $region131: #{tpu_custom_call.1} parent=0 // pred_check_branch
    %222 = sbr.rel (%p219) target = $region133
  $region132: #{tpu_custom_call.1} parent=0 // pred_region
    %s237 = sand.u32 1, 7
    %p238 = scmp.eq.s32.totalorder %s237, 0
    %p239 = pneg %p238
    // Predicated region
    $region145: #{tpu_custom_call.1} parent=132 // pred_check
      _
    $region146: #{tpu_custom_call.1} parent=132 // pred_check_branch
      %241 = sbr.rel (%p238) target = $region148
    $region147: #{tpu_custom_call.1} parent=132 // pred_region
      %s242 = sand.u32 1, 7
      %s243 = ssub.s32 1, %s242
      %s244 = scalar_lea.vmem %s215, %s243
      %s245 = ssub.s32 1, %s242
      %s246 = scalar_lea.vmem %s216, %s245 [#allocation2]
      %s247 = sshllo.u32 0, %s242
      loop: start=0, step=1, limit=1
      $region149: #{tpu_custom_call.1} parent=147 // loop_pre_header
        _
      $region150: #{tpu_custom_call.1} parent=147 // loop_header
        %s249 = sphi 0, %s253
        %p250 = scmp.ge.s32.totalorder %s249, 1
        %s254 = sphi %s244, %s244
        %s255 = sphi %s246, %s246
      $region151: #{tpu_custom_call.1} parent=147 // loop_header_branch
        %252 = sbr.rel (%p250) target = $region155
      $region152: #{tpu_custom_call.1} parent=147 // loop_body
        %v256 = vld [vmem:[%s254] sm:%s247]
        %257 = vst [vmem:[%s255] sm:%s247] %v256
      $region153: #{tpu_custom_call.1} parent=147 // loop_footer
        %s253 = sadd.s32 1, %s249
      $region154: #{tpu_custom_call.1} parent=147 // loop_footer_branch
        %248 = sbr.rel target = $region150
      $region155: #{tpu_custom_call.1} parent=147 // loop_exit
        _
    $region148: #{tpu_custom_call.1} parent=132 // pred_fallthru
      _
  $region133: #{tpu_custom_call.1} parent=0 // pred_fallthru
    _
  // Predicated region
  $region134: #{tpu_custom_call.1} parent=0 // pred_check
    %p223 = pneg %p219
  $region135: #{tpu_custom_call.1} parent=0 // pred_check_branch
    %225 = sbr.rel (%p223) target = $region137
  $region136: #{tpu_custom_call.1} parent=0 // pred_region
    %s226 = sshllo.u32 0, 1
    loop: start=0, step=1, limit=1
    $region138: #{tpu_custom_call.1} parent=136 // loop_pre_header
      _
    $region139: #{tpu_custom_call.1} parent=136 // loop_header
      %s228 = sphi 0, %s232
      %p229 = scmp.ge.s32.totalorder %s228, 1
      %s233 = sphi %s215, %s215
      %s234 = sphi %s216, %s216
    $region140: #{tpu_custom_call.1} parent=136 // loop_header_branch
      %231 = sbr.rel (%p229) target = $region144
    $region141: #{tpu_custom_call.1} parent=136 // loop_body
      %v235 = vld [vmem:[%s233] sm:%s226]
      %236 = vst [vmem:[%s234] sm:%s226] %v235
    $region142: #{tpu_custom_call.1} parent=136 // loop_footer
      %s232 = sadd.s32 1, %s228
    $region143: #{tpu_custom_call.1} parent=136 // loop_footer_branch
      %227 = sbr.rel target = $region139
    $region144: #{tpu_custom_call.1} parent=136 // loop_exit
      _
  $region137: #{tpu_custom_call.1} parent=0 // pred_fallthru
    _
  // Predicated region
  $region156: #{tpu_custom_call.1} parent=0 // pred_check
    _
  $region157: #{tpu_custom_call.1} parent=0 // pred_check_branch
    %260 = sbr.rel (0) target = $region159
  $region158: #{tpu_custom_call.1} parent=0 // pred_region
    %261 = vsyncadd %s217, 16
  $region159: #{tpu_custom_call.1} parent=0 // pred_fallthru
    _
  %s262 = sadd.s32 %s19, 5
  %s263 = sld [smem:[#allocation5 + %s262]]
  %s264 = scalar_lea.vmem %s3, %s263
  %s265 = scalar_lea.vmem [#allocation2], 5
  %s266 = scalar_lea.sflag [#allocation3], 5
  %p268 = scmp.lt.u32.totalorder 1, 8
  %p269 = pneg %p268
  // Predicated region
  $region160: #{tpu_custom_call.1} parent=0 // pred_check
    _
  $region161: #{tpu_custom_call.1} parent=0 // pred_check_branch
    %271 = sbr.rel (%p268) target = $region163
  $region162: #{tpu_custom_call.1} parent=0 // pred_region
    %s286 = sand.u32 1, 7
    %p287 = scmp.eq.s32.totalorder %s286, 0
    %p288 = pneg %p287
    // Predicated region
    $region175: #{tpu_custom_call.1} parent=162 // pred_check
      _
    $region176: #{tpu_custom_call.1} parent=162 // pred_check_branch
      %290 = sbr.rel (%p287) target = $region178
    $region177: #{tpu_custom_call.1} parent=162 // pred_region
      %s291 = sand.u32 1, 7
      %s292 = ssub.s32 1, %s291
      %s293 = scalar_lea.vmem %s264, %s292
      %s294 = ssub.s32 1, %s291
      %s295 = scalar_lea.vmem %s265, %s294 [#allocation2]
      %s296 = sshllo.u32 0, %s291
      loop: start=0, step=1, limit=1
      $region179: #{tpu_custom_call.1} parent=177 // loop_pre_header
        _
      $region180: #{tpu_custom_call.1} parent=177 // loop_header
        %s298 = sphi 0, %s302
        %p299 = scmp.ge.s32.totalorder %s298, 1
        %s303 = sphi %s293, %s293
        %s304 = sphi %s295, %s295
      $region181: #{tpu_custom_call.1} parent=177 // loop_header_branch
        %301 = sbr.rel (%p299) target = $region185
      $region182: #{tpu_custom_call.1} parent=177 // loop_body
        %v305 = vld [vmem:[%s303] sm:%s296]
        %306 = vst [vmem:[%s304] sm:%s296] %v305
      $region183: #{tpu_custom_call.1} parent=177 // loop_footer
        %s302 = sadd.s32 1, %s298
      $region184: #{tpu_custom_call.1} parent=177 // loop_footer_branch
        %297 = sbr.rel target = $region180
      $region185: #{tpu_custom_call.1} parent=177 // loop_exit
        _
    $region178: #{tpu_custom_call.1} parent=162 // pred_fallthru
      _
  $region163: #{tpu_custom_call.1} parent=0 // pred_fallthru
    _
  // Predicated region
  $region164: #{tpu_custom_call.1} parent=0 // pred_check
    %p272 = pneg %p268
  $region165: #{tpu_custom_call.1} parent=0 // pred_check_branch
    %274 = sbr.rel (%p272) target = $region167
  $region166: #{tpu_custom_call.1} parent=0 // pred_region
    %s275 = sshllo.u32 0, 1
    loop: start=0, step=1, limit=1
    $region168: #{tpu_custom_call.1} parent=166 // loop_pre_header
      _
    $region169: #{tpu_custom_call.1} parent=166 // loop_header
      %s277 = sphi 0, %s281
      %p278 = scmp.ge.s32.totalorder %s277, 1
      %s282 = sphi %s264, %s264
      %s283 = sphi %s265, %s265
    $region170: #{tpu_custom_call.1} parent=166 // loop_header_branch
      %280 = sbr.rel (%p278) target = $region174
    $region171: #{tpu_custom_call.1} parent=166 // loop_body
      %v284 = vld [vmem:[%s282] sm:%s275]
      %285 = vst [vmem:[%s283] sm:%s275] %v284
    $region172: #{tpu_custom_call.1} parent=166 // loop_footer
      %s281 = sadd.s32 1, %s277
    $region173: #{tpu_custom_call.1} parent=166 // loop_footer_branch
      %276 = sbr.rel target = $region169
    $region174: #{tpu_custom_call.1} parent=166 // loop_exit
      _
  $region167: #{tpu_custom_call.1} parent=0 // pred_fallthru
    _
  // Predicated region
  $region186: #{tpu_custom_call.1} parent=0 // pred_check
    _
  $region187: #{tpu_custom_call.1} parent=0 // pred_check_branch
    %309 = sbr.rel (0) target = $region189
  $region188: #{tpu_custom_call.1} parent=0 // pred_region
    %310 = vsyncadd %s266, 16
  $region189: #{tpu_custom_call.1} parent=0 // pred_fallthru
    _
  %s311 = sadd.s32 %s19, 6
  %s312 = sld [smem:[#allocation5 + %s311]]
  %s313 = scalar_lea.vmem %s3, %s312
  %s314 = scalar_lea.vmem [#allocation2], 6
  %s315 = scalar_lea.sflag [#allocation3], 6
  %p317 = scmp.lt.u32.totalorder 1, 8
  %p318 = pneg %p317
  // Predicated region
  $region190: #{tpu_custom_call.1} parent=0 // pred_check
    _
  $region191: #{tpu_custom_call.1} parent=0 // pred_check_branch
    %320 = sbr.rel (%p317) target = $region193
  $region192: #{tpu_custom_call.1} parent=0 // pred_region
    %s335 = sand.u32 1, 7
    %p336 = scmp.eq.s32.totalorder %s335, 0
    %p337 = pneg %p336
    // Predicated region
    $region205: #{tpu_custom_call.1} parent=192 // pred_check
      _
    $region206: #{tpu_custom_call.1} parent=192 // pred_check_branch
      %339 = sbr.rel (%p336) target = $region208
    $region207: #{tpu_custom_call.1} parent=192 // pred_region
      %s340 = sand.u32 1, 7
      %s341 = ssub.s32 1, %s340
      %s342 = scalar_lea.vmem %s313, %s341
      %s343 = ssub.s32 1, %s340
      %s344 = scalar_lea.vmem %s314, %s343 [#allocation2]
      %s345 = sshllo.u32 0, %s340
      loop: start=0, step=1, limit=1
      $region209: #{tpu_custom_call.1} parent=207 // loop_pre_header
        _
      $region210: #{tpu_custom_call.1} parent=207 // loop_header
        %s347 = sphi 0, %s351
        %p348 = scmp.ge.s32.totalorder %s347, 1
        %s352 = sphi %s342, %s342
        %s353 = sphi %s344, %s344
      $region211: #{tpu_custom_call.1} parent=207 // loop_header_branch
        %350 = sbr.rel (%p348) target = $region215
      $region212: #{tpu_custom_call.1} parent=207 // loop_body
        %v354 = vld [vmem:[%s352] sm:%s345]
        %355 = vst [vmem:[%s353] sm:%s345] %v354
      $region213: #{tpu_custom_call.1} parent=207 // loop_footer
        %s351 = sadd.s32 1, %s347
      $region214: #{tpu_custom_call.1} parent=207 // loop_footer_branch
        %346 = sbr.rel target = $region210
      $region215: #{tpu_custom_call.1} parent=207 // loop_exit
        _
    $region208: #{tpu_custom_call.1} parent=192 // pred_fallthru
      _
  $region193: #{tpu_custom_call.1} parent=0 // pred_fallthru
    _
  // Predicated region
  $region194: #{tpu_custom_call.1} parent=0 // pred_check
    %p321 = pneg %p317
  $region195: #{tpu_custom_call.1} parent=0 // pred_check_branch
    %323 = sbr.rel (%p321) target = $region197
  $region196: #{tpu_custom_call.1} parent=0 // pred_region
    %s324 = sshllo.u32 0, 1
    loop: start=0, step=1, limit=1
    $region198: #{tpu_custom_call.1} parent=196 // loop_pre_header
      _
    $region199: #{tpu_custom_call.1} parent=196 // loop_header
      %s326 = sphi 0, %s330
      %p327 = scmp.ge.s32.totalorder %s326, 1
      %s331 = sphi %s313, %s313
      %s332 = sphi %s314, %s314
    $region200: #{tpu_custom_call.1} parent=196 // loop_header_branch
      %329 = sbr.rel (%p327) target = $region204
    $region201: #{tpu_custom_call.1} parent=196 // loop_body
      %v333 = vld [vmem:[%s331] sm:%s324]
      %334 = vst [vmem:[%s332] sm:%s324] %v333
    $region202: #{tpu_custom_call.1} parent=196 // loop_footer
      %s330 = sadd.s32 1, %s326
    $region203: #{tpu_custom_call.1} parent=196 // loop_footer_branch
      %325 = sbr.rel target = $region199
    $region204: #{tpu_custom_call.1} parent=196 // loop_exit
      _
  $region197: #{tpu_custom_call.1} parent=0 // pred_fallthru
    _
  // Predicated region
  $region216: #{tpu_custom_call.1} parent=0 // pred_check
    _
  $region217: #{tpu_custom_call.1} parent=0 // pred_check_branch
    %358 = sbr.rel (0) target = $region219
  $region218: #{tpu_custom_call.1} parent=0 // pred_region
    %359 = vsyncadd %s315, 16
  $region219: #{tpu_custom_call.1} parent=0 // pred_fallthru
    _
  %s360 = sadd.s32 %s19, 7
  %s361 = sld [smem:[#allocation5 + %s360]]
  %s362 = scalar_lea.vmem %s3, %s361
  %s363 = scalar_lea.vmem [#allocation2], 7
  %s364 = scalar_lea.sflag [#allocation3], 7
  %p366 = scmp.lt.u32.totalorder 1, 8
  %p367 = pneg %p366
  // Predicated region
  $region220: #{tpu_custom_call.1} parent=0 // pred_check
    _
  $region221: #{tpu_custom_call.1} parent=0 // pred_check_branch
    %369 = sbr.rel (%p366) target = $region223
  $region222: #{tpu_custom_call.1} parent=0 // pred_region
    %s384 = sand.u32 1, 7
    %p385 = scmp.eq.s32.totalorder %s384, 0
    %p386 = pneg %p385
    // Predicated region
    $region235: #{tpu_custom_call.1} parent=222 // pred_check
      _
    $region236: #{tpu_custom_call.1} parent=222 // pred_check_branch
      %388 = sbr.rel (%p385) target = $region238
    $region237: #{tpu_custom_call.1} parent=222 // pred_region
      %s389 = sand.u32 1, 7
      %s390 = ssub.s32 1, %s389
      %s391 = scalar_lea.vmem %s362, %s390
      %s392 = ssub.s32 1, %s389
      %s393 = scalar_lea.vmem %s363, %s392 [#allocation2]
      %s394 = sshllo.u32 0, %s389
      loop: start=0, step=1, limit=1
      $region239: #{tpu_custom_call.1} parent=237 // loop_pre_header
        _
      $region240: #{tpu_custom_call.1} parent=237 // loop_header
        %s396 = sphi 0, %s400
        %p397 = scmp.ge.s32.totalorder %s396, 1
        %s401 = sphi %s391, %s391
        %s402 = sphi %s393, %s393
      $region241: #{tpu_custom_call.1} parent=237 // loop_header_branch
        %399 = sbr.rel (%p397) target = $region245
      $region242: #{tpu_custom_call.1} parent=237 // loop_body
        %v403 = vld [vmem:[%s401] sm:%s394]
        %404 = vst [vmem:[%s402] sm:%s394] %v403
      $region243: #{tpu_custom_call.1} parent=237 // loop_footer
        %s400 = sadd.s32 1, %s396
      $region244: #{tpu_custom_call.1} parent=237 // loop_footer_branch
        %395 = sbr.rel target = $region240
      $region245: #{tpu_custom_call.1} parent=237 // loop_exit
        _
    $region238: #{tpu_custom_call.1} parent=222 // pred_fallthru
      _
  $region223: #{tpu_custom_call.1} parent=0 // pred_fallthru
    _
  // Predicated region
  $region224: #{tpu_custom_call.1} parent=0 // pred_check
    %p370 = pneg %p366
  $region225: #{tpu_custom_call.1} parent=0 // pred_check_branch
    %372 = sbr.rel (%p370) target = $region227
  $region226: #{tpu_custom_call.1} parent=0 // pred_region
    %s373 = sshllo.u32 0, 1
    loop: start=0, step=1, limit=1
    $region228: #{tpu_custom_call.1} parent=226 // loop_pre_header
      _
    $region229: #{tpu_custom_call.1} parent=226 // loop_header
      %s375 = sphi 0, %s379
      %p376 = scmp.ge.s32.totalorder %s375, 1
      %s380 = sphi %s362, %s362
      %s381 = sphi %s363, %s363
    $region230: #{tpu_custom_call.1} parent=226 // loop_header_branch
      %378 = sbr.rel (%p376) target = $region234
    $region231: #{tpu_custom_call.1} parent=226 // loop_body
      %v382 = vld [vmem:[%s380] sm:%s373]
      %383 = vst [vmem:[%s381] sm:%s373] %v382
    $region232: #{tpu_custom_call.1} parent=226 // loop_footer
      %s379 = sadd.s32 1, %s375
    $region233: #{tpu_custom_call.1} parent=226 // loop_footer_branch
      %374 = sbr.rel target = $region229
    $region234: #{tpu_custom_call.1} parent=226 // loop_exit
      _
  $region227: #{tpu_custom_call.1} parent=0 // pred_fallthru
    _
  // Predicated region
  $region246: #{tpu_custom_call.1} parent=0 // pred_check
    _
  $region247: #{tpu_custom_call.1} parent=0 // pred_check_branch
    %407 = sbr.rel (0) target = $region249
  $region248: #{tpu_custom_call.1} parent=0 // pred_region
    %408 = vsyncadd %s364, 16
  $region249: #{tpu_custom_call.1} parent=0 // pred_fallthru
    _
  %s409 = smul.u32 1, 1
  %s410 = sshll.u32 %s409, 4
  %411 = dma.done [#allocation3], %s410
  %s412 = sshll.u32 %s409, 4
  %413 = dma.done %s70, %s412
  %s414 = sshll.u32 %s409, 4
  %415 = dma.done %s119, %s414
  %s416 = sshll.u32 %s409, 4
  %417 = dma.done %s168, %s416
  %s418 = sshll.u32 %s409, 4
  %419 = dma.done %s217, %s418
  %s420 = sshll.u32 %s409, 4
  %421 = dma.done %s266, %s420
  %s422 = sshll.u32 %s409, 4
  %423 = dma.done %s315, %s422
  %s424 = sshll.u32 %s409, 4
  %425 = dma.done %s364, %s424
  %v426 = vld [vmem:[%s1] sm:$0xff]
  %v427 = vld [vmem:[#allocation2] sm:$0xff]
  %v428 = vsub.f32 %v426, %v427
  %v429 = vmul.f32 %v428, %v428
  %vm430 = vcmask 15360
  %v431 = vsel %vm430, %v429, 0.0
  %432 = vadd.xlane.f32.xlu0 %v431
  %v433 = vpop.xlane.xlu0 %432
  %v434 = vld [vmem:[%s2] sm:$0xff]
  %v435 = vmul.f32 %v433, %v434
  %vm436 = vcmask 7168
  %437 = vst.msk [vmem:[%s4] sm:$0xff] %vm436, %v435
  // Predicated region
  $region250: #{tpu_custom_call.1} parent=0 // pred_check
    _
  $region251: #{tpu_custom_call.1} parent=0 // pred_check_branch
    %439 = sbr.rel (0) target = $region253
  $region252: #{tpu_custom_call.1} parent=0 // pred_region
    _
  $region253: #{tpu_custom_call.1} parent=0 // pred_fallthru
    _
  // Predicated region
  $region254: #{tpu_custom_call.1} parent=0 // pred_check
    _
  $region255: #{tpu_custom_call.1} parent=0 // pred_check_branch
    %441 = sbr.rel (0) target = $region257
  $region256: #{tpu_custom_call.1} parent=0 // pred_region
    _
  $region257: #{tpu_custom_call.1} parent=0 // pred_fallthru
    _
  %442 = vsyncmov [#allocation3]
  %s443 = vpop.sfrf %442
  %p444 = scmp.eq.s32.totalorder %s443, 0
  %p445 = pneg %p444
  %447 = shalt.err (%p445)
  %s448 = scalar_lea.sflag [#allocation3], 1
  %449 = vsyncmov %s448
  %s450 = vpop.sfrf %449
  %p451 = scmp.eq.s32.totalorder %s450, 0
  %p452 = pneg %p451
  %454 = shalt.err (%p452)
  %s455 = scalar_lea.sflag [#allocation3], 2
  %456 = vsyncmov %s455
  %s457 = vpop.sfrf %456
  %p458 = scmp.eq.s32.totalorder %s457, 0
  %p459 = pneg %p458
  %461 = shalt.err (%p459)
  %s462 = scalar_lea.sflag [#allocation3], 3
  %463 = vsyncmov %s462
  %s464 = vpop.sfrf %463
  %p465 = scmp.eq.s32.totalorder %s464, 0
  %p466 = pneg %p465
  %468 = shalt.err (%p466)
  %s469 = scalar_lea.sflag [#allocation3], 4
  %470 = vsyncmov %s469
  %s471 = vpop.sfrf %470
  %p472 = scmp.eq.s32.totalorder %s471, 0
  %p473 = pneg %p472
  %475 = shalt.err (%p473)
  %s476 = scalar_lea.sflag [#allocation3], 5
  %477 = vsyncmov %s476
  %s478 = vpop.sfrf %477
  %p479 = scmp.eq.s32.totalorder %s478, 0
  %p480 = pneg %p479
  %482 = shalt.err (%p480)
  %s483 = scalar_lea.sflag [#allocation3], 6
  %484 = vsyncmov %s483
  %s485 = vpop.sfrf %484
  %p486 = scmp.eq.s32.totalorder %s485, 0
  %p487 = pneg %p486
  %489 = shalt.err (%p487)
  %s490 = scalar_lea.sflag [#allocation3], 7
  %491 = vsyncmov %s490
  %s492 = vpop.sfrf %491
  %p493 = scmp.eq.s32.totalorder %s492, 0
  %p494 = pneg %p493
  %496 = shalt.err (%p494)

</llo_original>
